<compile_context>
chip_gen: v7x
topology: tpu7x:2x2x1
jax: 0.10.0
libtpu: 0.0.40
codegen_flags: <defaults>
</compile_context>

<pallas_src>
import jax
import jax.numpy as jnp
from jax.experimental import pallas as pl
from jax.experimental.pallas import tpu as pltpu

_LANES = 128
_MAX_ROW_BLOCK = 4096            # (4096, 128) f32 block = 2 MiB per operand
_SMALL_FALLBACK_ELEMS = 65536    # below this, plain jnp (XLA fuses it anyway)


def _custom_loss_kernel(beta_ref, iou_ref, prev_ref, center_ref, aspect_ref, out_ref):
    beta = beta_ref[0, 0]
    iou = iou_ref[...].astype(jnp.float32)
    prev = prev_ref[...].astype(jnp.float32)
    center = center_ref[...].astype(jnp.float32)
    aspect = aspect_ref[...].astype(jnp.float32)

    term1 = prev + center + aspect
    term2 = jnp.exp(-beta * iou) * center       # single EUP transcendental / element
    out_ref[...] = (term1 + term2).astype(out_ref.dtype)


def _round_up(x, m):
    return ((x + m - 1) // m) * m


def custom_loss(iou, prev_loss, center_loss, aspect_loss, beta=100.0):
    """Pallas implementation of Custom_Loss.forward (elementwise, same-shape out)."""
    assert iou.shape == prev_loss.shape == center_loss.shape == aspect_loss.shape
    orig_shape = iou.shape
    inputs = (iou, prev_loss, center_loss, aspect_loss)
    out_dtype = jnp.result_type(*(a.dtype for a in inputs))
    n = iou.size

    # Small-size fallback: pallas_call launch overhead would dominate.
    if n < _SMALL_FALLBACK_ELEMS:
        return (prev_loss + center_loss + aspect_loss
                + jnp.exp(-beta * iou) * center_loss).astype(out_dtype)

    # Lane-dense slab: (rows, 128) with rows padded only to a multiple of 8
    # (so last two dims satisfy the (8, 128) tiling constraint).  If n is a
    # multiple of 1024 this is a zero-copy reshape.
    rows = -(-n // _LANES)                       # ceil(n / 128)
    padded_rows = _round_up(rows, 8)
    padded_n = padded_rows * _LANES

    def to_slab(x):
        flat = jnp.ravel(x)
        if padded_n != n:
            flat = jnp.pad(flat, (0, padded_n - n))
        return flat.reshape(padded_rows, _LANES)

    slabs = [to_slab(a) for a in inputs]

    # Pick the row block: as large as possible (<= 4096), but make sure the
    # grid has >= 2 steps so both TensorCores get work on v7x megacore.
    row_block = min(_MAX_ROW_BLOCK, padded_rows)
    num_blocks = -(-padded_rows // row_block)
    if num_blocks < 2 and padded_rows >= 16:
        row_block = _round_up(-(-padded_rows // 2), 8)
        num_blocks = -(-padded_rows // row_block)
    grid = (num_blocks,)                          # ceil-div: final block masked

    block_spec = pl.BlockSpec((row_block, _LANES), lambda i: (i, 0))
    beta_spec = pl.BlockSpec(memory_space=pltpu.MemorySpace.SMEM)

    in_bytes = sum(padded_n * jnp.dtype(a.dtype).itemsize for a in inputs)
    out_bytes = padded_n * jnp.dtype(out_dtype).itemsize
    cost = pl.CostEstimate(
        flops=5 * padded_n,
        transcendentals=padded_n,
        bytes_accessed=in_bytes + out_bytes,
    )

    beta_arr = jnp.full((1, 1), beta, dtype=jnp.float32)

    out = pl.pallas_call(
        _custom_loss_kernel,
        out_shape=jax.ShapeDtypeStruct((padded_rows, _LANES), out_dtype),
        grid_spec=pltpu.PrefetchScalarGridSpec(
            num_scalar_prefetch=0,
            grid=grid,
            in_specs=[beta_spec, block_spec, block_spec, block_spec, block_spec],
            out_specs=block_spec,
        ),
        compiler_params=pltpu.CompilerParams(
            dimension_semantics=("parallel",),
            vmem_limit_bytes=32 * 1024 * 1024,   # footprint (~20 MiB) + margin
        ),
        cost_estimate=cost,
    )(beta_arr, *slabs)

    if padded_n != n:
        out = out.reshape(-1)[:n]
    return out.reshape(orig_shape)


def _custom_loss_ref(iou, prev_loss, center_loss, aspect_loss, beta=100.0):
    term1 = prev_loss + center_loss + aspect_loss
    term2 = jnp.exp(-beta * iou) * center_loss
    return term1 + term2


def _run_case(key, shape, beta):
    k1, k2, k3, k4 = jax.random.split(key, 4)
    iou = jax.random.uniform(k1, shape, dtype=jnp.float32)          # IoU in [0, 1]
    prev_loss = jax.random.uniform(k2, shape, dtype=jnp.float32)
    center_loss = jax.random.uniform(k3, shape, dtype=jnp.float32)
    aspect_loss = jax.random.uniform(k4, shape, dtype=jnp.float32)

    out = custom_loss(iou, prev_loss, center_loss, aspect_loss, beta=beta)
    out = jax.block_until_ready(out)

    ref = _custom_loss_ref(iou, prev_loss, center_loss, aspect_loss, beta=beta)
    assert out.shape == shape
    assert jnp.allclose(out, ref, rtol=1e-5, atol=1e-6)


if __name__ == "__main__":
    key = jax.random.PRNGKey(0)
    k_a, k_b, k_c = jax.random.split(key, 3)

    # Small detection-head-like map: exercises the small-size fallback path.
    _run_case(k_a, (2, 4, 16, 16), beta=100.0)

    # 1024-aligned element count: kernel path, zero-copy reshape (no padding).
    _run_case(k_b, (2, 4, 96, 96), beta=100.0)

    # Non-aligned element count: kernel path with row padding + masked final block.
    _run_case(k_c, (3, 5, 77, 61), beta=50.0)

    print("KERNEL_OK")
</pallas_src>

<mosaic_0001>
module attributes {stable_mosaic.version = 11 : i64} {
  func.func @_custom_loss_kernel(%arg0: i32, %arg1: memref<1x1xf32, #tpu.memory_space<smem>>, %arg2: memref<288x128xf32, #tpu.memory_space<vmem>>, %arg3: memref<288x128xf32, #tpu.memory_space<vmem>>, %arg4: memref<288x128xf32, #tpu.memory_space<vmem>>, %arg5: memref<288x128xf32, #tpu.memory_space<vmem>>, %arg6: memref<288x128xf32, #tpu.memory_space<vmem>>) attributes {dimension_semantics = [#tpu.dimension_semantics<parallel>], iteration_bounds = array<i64: 2>, scalar_prefetch = 0 : i64, scratch_operands = 0 : i64, tpu.core_type = #tpu.core_type<tc>, window_params = [{transform_indices = @transform_0, window_bounds = array<i64: 1, 1>}, {transform_indices = @transform_1, window_bounds = array<i64: 288, 128>}, {transform_indices = @transform_2, window_bounds = array<i64: 288, 128>}, {transform_indices = @transform_3, window_bounds = array<i64: 288, 128>}, {transform_indices = @transform_4, window_bounds = array<i64: 288, 128>}, {transform_indices = @transform_5, window_bounds = array<i64: 288, 128>}]} {
    %c0 = arith.constant 0 : index
    %c0_0 = arith.constant 0 : index
    %0 = memref.load %arg1[%c0, %c0_0] : memref<1x1xf32, #tpu.memory_space<smem>>
    %c0_1 = arith.constant 0 : index
    %c0_2 = arith.constant 0 : index
    %1 = vector.load %arg2[%c0_1, %c0_2] : memref<288x128xf32, #tpu.memory_space<vmem>>, vector<288x128xf32>
    %c0_3 = arith.constant 0 : index
    %c0_4 = arith.constant 0 : index
    %2 = vector.load %arg3[%c0_3, %c0_4] : memref<288x128xf32, #tpu.memory_space<vmem>>, vector<288x128xf32>
    %c0_5 = arith.constant 0 : index
    %c0_6 = arith.constant 0 : index
    %3 = vector.load %arg4[%c0_5, %c0_6] : memref<288x128xf32, #tpu.memory_space<vmem>>, vector<288x128xf32>
    %c0_7 = arith.constant 0 : index
    %c0_8 = arith.constant 0 : index
    %4 = vector.load %arg5[%c0_7, %c0_8] : memref<288x128xf32, #tpu.memory_space<vmem>>, vector<288x128xf32>
    %5 = arith.addf %2, %3 : vector<288x128xf32>
    %6 = arith.addf %5, %4 : vector<288x128xf32>
    %cst = arith.constant 0.000000e+00 : f32
    %7 = arith.subf %cst, %0 : f32
    %8 = vector.broadcast %7 : f32 to vector<288x128xf32>
    %9 = arith.mulf %8, %1 : vector<288x128xf32>
    %10 = math.exp %9 : vector<288x128xf32>
    %11 = arith.mulf %10, %3 : vector<288x128xf32>
    %12 = arith.addf %6, %11 : vector<288x128xf32>
    %c0_9 = arith.constant 0 : index
    %c0_10 = arith.constant 0 : index
    %13 = vector.load %arg6[%c0_9, %c0_10] : memref<288x128xf32, #tpu.memory_space<vmem>>, vector<288x128xf32>
    tpu.vector_store %arg6[%c0_9, %c0_10], %12 {strides = array<i32>} : memref<288x128xf32, #tpu.memory_space<vmem>>, vector<288x128xf32>,
    return
  }
  func.func @transform_0(%arg0: i32) -> (i32, i32) {
    %c0_i32 = arith.constant 0 : i32
    %c0_i32_0 = arith.constant 0 : i32
    %c0_i32_1 = arith.constant 0 : i32
    return %c0_i32, %c0_i32_0 : i32, i32
  }
  func.func @transform_1(%arg0: i32) -> (i32, i32) {
    %c0_i32 = arith.constant 0 : i32
    %c0_i32_0 = arith.constant 0 : i32
    return %arg0, %c0_i32 : i32, i32
  }
  func.func @transform_2(%arg0: i32) -> (i32, i32) {
    %c0_i32 = arith.constant 0 : i32
    %c0_i32_0 = arith.constant 0 : i32
    return %arg0, %c0_i32 : i32, i32
  }
  func.func @transform_3(%arg0: i32) -> (i32, i32) {
    %c0_i32 = arith.constant 0 : i32
    %c0_i32_0 = arith.constant 0 : i32
    return %arg0, %c0_i32 : i32, i32
  }
  func.func @transform_4(%arg0: i32) -> (i32, i32) {
    %c0_i32 = arith.constant 0 : i32
    %c0_i32_0 = arith.constant 0 : i32
    return %arg0, %c0_i32 : i32, i32
  }
  func.func @transform_5(%arg0: i32) -> (i32, i32) {
    %c0_i32 = arith.constant 0 : i32
    %c0_i32_0 = arith.constant 0 : i32
    return %arg0, %c0_i32 : i32, i32
  }
}

</mosaic_0001>

<llo_original>
// kernel: tpu_custom_call.1
$region0: #{tpu_custom_call.1}
  #allocation0 [shape = 'u32[]', space=smem, size = 0x4, offset = 0x4, fixed_abs, tag = 'smem constant byte address 0x4 - core index']
  #allocation1 [shape = 'u32[144,128]{1,0:T(1,128)}', space=vmem, size = 0x12000, scoped, tag = 'internal scratch']
  #allocation2 [shape = 'f32[1,1]{1,0:T(1,128)S(6)}', space=smem, size = 0x200, scoped, tag = 'scoped memory for tpu_custom_call.1']
  %s0 = inlined_call_operand.<no memory space> [shape: f32[1,1], index: 0, kind: input, shape index: {}]
  %s1 = inlined_call_operand.hbm [shape: f32[576,128], index: 1, kind: input, shape index: {}]
  %s2 = inlined_call_operand.hbm [shape: f32[576,128], index: 2, kind: input, shape index: {}]
  %s3 = inlined_call_operand.hbm [shape: f32[576,128], index: 3, kind: input, shape index: {}]
  %s4 = inlined_call_operand.hbm [shape: f32[576,128], index: 4, kind: input, shape index: {}]
  %s5 = inlined_call_operand.hbm [shape: f32[576,128], index: 5, kind: output, shape index: {}]
  %s6 = sld [smem:[#allocation0]]
  $region69: #{tpu_custom_call.1} parent=0
    _
  %s8 = ssub.s32 1, %s6
  %s9 = scalar_select 0, %s8, %s6
  %10 = sst [smem:[#allocation2]] %s0
  $region1: #{tpu_custom_call.1} parent=0
    #allocation3 [shape = 'u8[294912]{0}', space=vmem, size = 0x48000, scoped, tag = 'input window, operand 1']
    #allocation4 [shape = 's32[2]{0}', space=sflag, size = 0x8, scoped, tag = 'scoped memory for tpu_custom_call.1']
    #allocation5 [shape = 's32[2]{0}', space=sflag, size = 0x8, scoped, tag = 'scoped memory for tpu_custom_call.1']
    #allocation6 [shape = 'u8[294912]{0}', space=vmem, size = 0x48000, scoped, tag = 'input window, operand 2']
    #allocation7 [shape = 's32[2]{0}', space=sflag, size = 0x8, scoped, tag = 'scoped memory for tpu_custom_call.1']
    #allocation8 [shape = 'u8[294912]{0}', space=vmem, size = 0x48000, scoped, tag = 'input window, operand 3']
    #allocation9 [shape = 'u8[294912]{0}', space=vmem, size = 0x48000, scoped, tag = 'input window, operand 4']
    #allocation10 [shape = 's32[2]{0}', space=sflag, size = 0x8, scoped, tag = 'scoped memory for tpu_custom_call.1']
    #allocation11 [shape = 'u8[294912]{0}', space=vmem, size = 0x48000, scoped, tag = 'output window, operand 0']
    %11 = vsyncpa [#allocation4], 0
    %s12 = scalar_lea.sflag [#allocation4], 1
    %13 = vsyncpa %s12, 0
    %14 = vsyncpa [#allocation7], 0
    %s15 = scalar_lea.sflag [#allocation7], 1
    %16 = vsyncpa %s15, 0
    %17 = vsyncpa [#allocation10], 0
    %s18 = scalar_lea.sflag [#allocation10], 1
    %19 = vsyncpa %s18, 0
    %20 = vsyncpa [#allocation5], 0
    %s21 = scalar_lea.sflag [#allocation5], 1
    %22 = vsyncpa %s21, 0
    loop: start=0, step=1, limit=4
    $region2: #{tpu_custom_call.1} parent=1 // loop_pre_header
      _
    $region3: #{tpu_custom_call.1} parent=1 // loop_header
      %s24 = sphi 0, %s28
      %p25 = scmp.ge.s32.totalorder %s24, 4
      %s32 = sphi 0, %s32
      %s34 = sphi 0, %s32
      %s35 = sphi 0, %s34
      %s49 = sphi 0, %s35
      %s55 = sphi 0, %s57
      %s58 = sphi 0, %s55
      %s59 = sphi 0, %s58
      %s75 = sphi 0, %s59
      %s81 = sphi 0, %s83
      %s84 = sphi 0, %s81
      %s85 = sphi 0, %s84
      %s101 = sphi 0, %s85
      %s107 = sphi 0, %s109
      %s110 = sphi 0, %s107
      %s111 = sphi 0, %s110
      %s127 = sphi 0, %s111
      %s133 = sphi 0, %s135
      %s136 = sphi 0, %s133
      %s137 = sphi 0, %s136
      %s153 = sphi 0, %s137
      %s159 = sphi 0, %s161
      %s162 = sphi 0, %s159
      %s163 = sphi 0, %s162
      %s179 = sphi 0, %s163
    $region4: #{tpu_custom_call.1} parent=1 // loop_header_branch
      %27 = sbr.rel (%p25) target = $region8
    $region5: #{tpu_custom_call.1} parent=1 // loop_body
      %s29 = ssub.s32 %s24, 1
      %s30 = ssub.s32 %s24, 2
      %s31 = sadd.s32 %s24, 1
      %s33 = sadd.s32 %s32, 1
      %p36 = scmp.eq.s32.totalorder %s24, 1
      %p37 = scmp.ne.s32.totalorder %s32, %s34
      %p38 = scmp.eq.s32.totalorder %s24, 0
      %p39 = por %p37, %p38
      %p40 = scmp.ne.s32.totalorder %s32, %s34
      %p41 = scmp.eq.s32.totalorder %s29, 1
      %p42 = por %p40, %p41
      %p43 = scmp.ne.s32.totalorder %s34, %s35
      %p44 = scmp.eq.s32.totalorder %s29, 0
      %p45 = por %p43, %p44
      %p46 = scmp.ne.s32.totalorder %s34, %s35
      %p47 = scmp.eq.s32.totalorder %s30, 1
      %p48 = por %p46, %p47
      %p50 = scmp.ne.s32.totalorder %s35, %s49
      %p51 = scmp.eq.s32.totalorder %s30, 0
      %p52 = por %p50, %p51
      %s53 = ssub.s32 %s24, %s31
      %p54 = scmp.eq.s32.totalorder %s53, 0
      %s56 = sadd.s32 %s55, 1
      %s57 = scalar_select %p54, %s55, %s56
      %p60 = pneg %p54
      %p61 = scmp.eq.s32.totalorder %s24, 1
      %p62 = por %p60, %p61
      %p63 = scmp.ne.s32.totalorder %s55, %s58
      %p64 = scmp.eq.s32.totalorder %s24, 0
      %p65 = por %p63, %p64
      %p66 = scmp.ne.s32.totalorder %s55, %s58
      %p67 = scmp.eq.s32.totalorder %s29, 1
      %p68 = por %p66, %p67
      %p69 = scmp.ne.s32.totalorder %s58, %s59
      %p70 = scmp.eq.s32.totalorder %s29, 0
      %p71 = por %p69, %p70
      %p72 = scmp.ne.s32.totalorder %s58, %s59
      %p73 = scmp.eq.s32.totalorder %s30, 1
      %p74 = por %p72, %p73
      %p76 = scmp.ne.s32.totalorder %s59, %s75
      %p77 = scmp.eq.s32.totalorder %s30, 0
      %p78 = por %p76, %p77
      %s79 = ssub.s32 %s24, %s31
      %p80 = scmp.eq.s32.totalorder %s79, 0
      %s82 = sadd.s32 %s81, 1
      %s83 = scalar_select %p80, %s81, %s82
      %p86 = pneg %p80
      %p87 = scmp.eq.s32.totalorder %s24, 1
      %p88 = por %p86, %p87
      %p89 = scmp.ne.s32.totalorder %s81, %s84
      %p90 = scmp.eq.s32.totalorder %s24, 0
      %p91 = por %p89, %p90
      %p92 = scmp.ne.s32.totalorder %s81, %s84
      %p93 = scmp.eq.s32.totalorder %s29, 1
      %p94 = por %p92, %p93
      %p95 = scmp.ne.s32.totalorder %s84, %s85
      %p96 = scmp.eq.s32.totalorder %s29, 0
      %p97 = por %p95, %p96
      %p98 = scmp.ne.s32.totalorder %s84, %s85
      %p99 = scmp.eq.s32.totalorder %s30, 1
      %p100 = por %p98, %p99
      %p102 = scmp.ne.s32.totalorder %s85, %s101
      %p103 = scmp.eq.s32.totalorder %s30, 0
      %p104 = por %p102, %p103
      %s105 = ssub.s32 %s24, %s31
      %p106 = scmp.eq.s32.totalorder %s105, 0
      %s108 = sadd.s32 %s107, 1
      %s109 = scalar_select %p106, %s107, %s108
      %p112 = pneg %p106
      %p113 = scmp.eq.s32.totalorder %s24, 1
      %p114 = por %p112, %p113
      %p115 = scmp.ne.s32.totalorder %s107, %s110
      %p116 = scmp.eq.s32.totalorder %s24, 0
      %p117 = por %p115, %p116
      %p118 = scmp.ne.s32.totalorder %s107, %s110
      %p119 = scmp.eq.s32.totalorder %s29, 1
      %p120 = por %p118, %p119
      %p121 = scmp.ne.s32.totalorder %s110, %s111
      %p122 = scmp.eq.s32.totalorder %s29, 0
      %p123 = por %p121, %p122
      %p124 = scmp.ne.s32.totalorder %s110, %s111
      %p125 = scmp.eq.s32.totalorder %s30, 1
      %p126 = por %p124, %p125
      %p128 = scmp.ne.s32.totalorder %s111, %s127
      %p129 = scmp.eq.s32.totalorder %s30, 0
      %p130 = por %p128, %p129
      %s131 = ssub.s32 %s24, %s31
      %p132 = scmp.eq.s32.totalorder %s131, 0
      %s134 = sadd.s32 %s133, 1
      %s135 = scalar_select %p132, %s133, %s134
      %p138 = pneg %p132
      %p139 = scmp.eq.s32.totalorder %s24, 1
      %p140 = por %p138, %p139
      %p141 = scmp.ne.s32.totalorder %s133, %s136
      %p142 = scmp.eq.s32.totalorder %s24, 0
      %p143 = por %p141, %p142
      %p144 = scmp.ne.s32.totalorder %s133, %s136
      %p145 = scmp.eq.s32.totalorder %s29, 1
      %p146 = por %p144, %p145
      %p147 = scmp.ne.s32.totalorder %s136, %s137
      %p148 = scmp.eq.s32.totalorder %s29, 0
      %p149 = por %p147, %p148
      %p150 = scmp.ne.s32.totalorder %s136, %s137
      %p151 = scmp.eq.s32.totalorder %s30, 1
      %p152 = por %p150, %p151
      %p154 = scmp.ne.s32.totalorder %s137, %s153
      %p155 = scmp.eq.s32.totalorder %s30, 0
      %p156 = por %p154, %p155
      %s157 = ssub.s32 %s24, %s31
      %p158 = scmp.eq.s32.totalorder %s157, 0
      %s160 = sadd.s32 %s159, 1
      %s161 = scalar_select %p158, %s159, %s160
      %p164 = pneg %p158
      %p165 = scmp.eq.s32.totalorder %s24, 1
      %p166 = por %p164, %p165
      %p167 = scmp.ne.s32.totalorder %s159, %s162
      %p168 = scmp.eq.s32.totalorder %s24, 0
      %p169 = por %p167, %p168
      %p170 = scmp.ne.s32.totalorder %s159, %s162
      %p171 = scmp.eq.s32.totalorder %s29, 1
      %p172 = por %p170, %p171
      %p173 = scmp.ne.s32.totalorder %s162, %s163
      %p174 = scmp.eq.s32.totalorder %s29, 0
      %p175 = por %p173, %p174
      %p176 = scmp.ne.s32.totalorder %s162, %s163
      %p177 = scmp.eq.s32.totalorder %s30, 1
      %p178 = por %p176, %p177
      %p180 = scmp.ne.s32.totalorder %s163, %s179
      %p181 = scmp.eq.s32.totalorder %s30, 0
      %p182 = por %p180, %p181
      %p183 = scmp.le.s32.totalorder 1, %s24
      %p184 = scmp.lt.s32.totalorder %s24, 3
      %p185 = pnand %p183, %p184
      %p186 = pneg %p185
      // Predicated region
      $region9: #{tpu_custom_call.1} parent=5 // pred_check
        _
      $region10: #{tpu_custom_call.1} parent=5 // pred_check_branch
        %188 = sbr.rel (%p185) target = $region12
      $region11: #{tpu_custom_call.1} parent=5 // pred_region
        %s189 = ssub.s32 %s24, 1
        // Predicated region
        $region13: #{tpu_custom_call.1} parent=11 // pred_check
          %p190 = pneg %p45
        $region14: #{tpu_custom_call.1} parent=11 // pred_check_branch
          %192 = sbr.rel (%p190) target = $region16
        $region15: #{tpu_custom_call.1} parent=11 // pred_region
          _
        $region16: #{tpu_custom_call.1} parent=11 // pred_fallthru
          _
      $region12: #{tpu_custom_call.1} parent=5 // pred_fallthru
        _
      %p193 = scmp.lt.s32.totalorder %s24, 2
      // Predicated region
      $region17: #{tpu_custom_call.1} parent=5 // pred_check
        %p194 = pneg %p193
      $region18: #{tpu_custom_call.1} parent=5 // pred_check_branch
        %196 = sbr.rel (%p194) target = $region20
      $region19: #{tpu_custom_call.1} parent=5 // pred_region
        // Predicated region
        $region21: #{tpu_custom_call.1} parent=19 // pred_check
          %p197 = pneg %p65
        $region22: #{tpu_custom_call.1} parent=19 // pred_check_branch
          %199 = sbr.rel (%p197) target = $region24
        $region23: #{tpu_custom_call.1} parent=19 // pred_region
          %s200 = sand.u32 %s55, 1
          %s201 = scalar_lea.sflag [#allocation4], %s200
          %s202 = sand.u32 %s55, 1
          %s203 = smul.addr %s202, 288
          %s204 = scalar_lea.vmem [#allocation3], %s203
          %s205 = smul.u32 36, %s24
          %s207 = ssub.s32 4608, 4608
          %208 = vsyncadd %s201, %s207
          %s209 = smul.addr %s205, 128
          %s210 = scalar_lea.hbm %s1, %s209
          %s211 = sshll.u32 %s204, 4
          %s212 = int_to_ptr.vmem [resolvable:$true] %s211
          %217 = dma.hbm_to_vmem [thread:$0]  %s210, 4608, %s212, %s201, 128, 128, 8
        $region24: #{tpu_custom_call.1} parent=19 // pred_fallthru
          _
        // Predicated region
        $region25: #{tpu_custom_call.1} parent=19 // pred_check
          %p218 = pneg %p91
        $region26: #{tpu_custom_call.1} parent=19 // pred_check_branch
          %220 = sbr.rel (%p218) target = $region28
        $region27: #{tpu_custom_call.1} parent=19 // pred_region
          %s221 = sand.u32 %s24, 1
          %s222 = scalar_lea.sflag [#allocation7], %s221
          %s223 = sand.u32 %s81, 1
          %s224 = smul.addr %s223, 288
          %s225 = scalar_lea.vmem [#allocation6], %s224
          %s226 = smul.u32 36, %s24
          %s228 = ssub.s32 4608, 4608
          %229 = vsyncadd %s222, %s228
          %s230 = smul.addr %s226, 128
          %s231 = scalar_lea.hbm %s2, %s230
          %s232 = sshll.u32 %s225, 4
          %s233 = int_to_ptr.vmem [resolvable:$true] %s232
          %238 = dma.hbm_to_vmem [thread:$0]  %s231, 4608, %s233, %s222, 128, 128, 8
        $region28: #{tpu_custom_call.1} parent=19 // pred_fallthru
          _
        // Predicated region
        $region29: #{tpu_custom_call.1} parent=19 // pred_check
          %p239 = pneg %p117
        $region30: #{tpu_custom_call.1} parent=19 // pred_check_branch
          %241 = sbr.rel (%p239) target = $region32
        $region31: #{tpu_custom_call.1} parent=19 // pred_region
          %s242 = sand.u32 %s24, 1
          %s243 = scalar_lea.sflag [#allocation7], %s242
          %s244 = sand.u32 %s107, 1
          %s245 = smul.addr %s244, 288
          %s246 = scalar_lea.vmem [#allocation8], %s245
          %s247 = smul.u32 36, %s24
          %s249 = ssub.s32 4608, 4608
          %250 = vsyncadd %s243, %s249
          %s251 = smul.addr %s247, 128
          %s252 = scalar_lea.hbm %s3, %s251
          %s253 = sshll.u32 %s246, 4
          %s254 = int_to_ptr.vmem [resolvable:$true] %s253
          %259 = dma.hbm_to_vmem [thread:$0]  %s252, 4608, %s254, %s243, 128, 128, 8
        $region32: #{tpu_custom_call.1} parent=19 // pred_fallthru
          _
        // Predicated region
        $region33: #{tpu_custom_call.1} parent=19 // pred_check
          %p260 = pneg %p143
        $region34: #{tpu_custom_call.1} parent=19 // pred_check_branch
          %262 = sbr.rel (%p260) target = $region36
        $region35: #{tpu_custom_call.1} parent=19 // pred_region
          %s263 = sand.u32 %s133, 1
          %s264 = scalar_lea.sflag [#allocation10], %s263
          %s265 = sand.u32 %s133, 1
          %s266 = smul.addr %s265, 288
          %s267 = scalar_lea.vmem [#allocation9], %s266
          %s268 = smul.u32 36, %s24
          %s270 = ssub.s32 4608, 4608
          %271 = vsyncadd %s264, %s270
          %s272 = smul.addr %s268, 128
          %s273 = scalar_lea.hbm %s4, %s272
          %s274 = sshll.u32 %s267, 4
          %s275 = int_to_ptr.vmem [resolvable:$true] %s274
          %280 = dma.hbm_to_vmem [thread:$0]  %s273, 4608, %s275, %s264, 128, 128, 8
        $region36: #{tpu_custom_call.1} parent=19 // pred_fallthru
          _
      $region20: #{tpu_custom_call.1} parent=5 // pred_fallthru
        _
      %p281 = scmp.le.s32.totalorder 1, %s24
      %p282 = scmp.lt.s32.totalorder %s24, 3
      %p283 = pnand %p281, %p282
      %p284 = pneg %p283
      // Predicated region
      $region37: #{tpu_custom_call.1} parent=5 // pred_check
        _
      $region38: #{tpu_custom_call.1} parent=5 // pred_check_branch
        %286 = sbr.rel (%p283) target = $region40
      $region39: #{tpu_custom_call.1} parent=5 // pred_region
        %s287 = ssub.s32 %s24, 1
        %s288 = sand.u32 %s58, 1
        %s289 = scalar_lea.sflag [#allocation4], %s288
        %s290 = sand.u32 %s58, 1
        %s291 = smul.addr %s290, 288
        %s292 = scalar_lea.vmem [#allocation3], %s291
        // Predicated region
        $region41: #{tpu_custom_call.1} parent=39 // pred_check
          %p293 = pneg %p71
        $region42: #{tpu_custom_call.1} parent=39 // pred_check_branch
          %295 = sbr.rel (%p293) target = $region44
        $region43: #{tpu_custom_call.1} parent=39 // pred_region
          %296 = dma.done %s289, 4608
        $region44: #{tpu_custom_call.1} parent=39 // pred_fallthru
          _
        %s297 = sand.u32 %s29, 1
        %s298 = scalar_lea.sflag [#allocation7], %s297
        %s299 = sand.u32 %s84, 1
        %s300 = smul.addr %s299, 288
        %s301 = scalar_lea.vmem [#allocation6], %s300
        // Predicated region
        $region45: #{tpu_custom_call.1} parent=39 // pred_check
          %p302 = pneg %p97
        $region46: #{tpu_custom_call.1} parent=39 // pred_check_branch
          %304 = sbr.rel (%p302) target = $region48
        $region47: #{tpu_custom_call.1} parent=39 // pred_region
          %305 = dma.done %s298, 4608
        $region48: #{tpu_custom_call.1} parent=39 // pred_fallthru
          _
        %s306 = sand.u32 %s29, 1
        %s307 = scalar_lea.sflag [#allocation7], %s306
        %s308 = sand.u32 %s110, 1
        %s309 = smul.addr %s308, 288
        %s310 = scalar_lea.vmem [#allocation8], %s309
        // Predicated region
        $region49: #{tpu_custom_call.1} parent=39 // pred_check
          %p311 = pneg %p123
        $region50: #{tpu_custom_call.1} parent=39 // pred_check_branch
          %313 = sbr.rel (%p311) target = $region52
        $region51: #{tpu_custom_call.1} parent=39 // pred_region
          %314 = dma.done %s307, 4608
        $region52: #{tpu_custom_call.1} parent=39 // pred_fallthru
          _
        %s315 = sand.u32 %s136, 1
        %s316 = scalar_lea.sflag [#allocation10], %s315
        %s317 = sand.u32 %s136, 1
        %s318 = smul.addr %s317, 288
        %s319 = scalar_lea.vmem [#allocation9], %s318
        // Predicated region
        $region53: #{tpu_custom_call.1} parent=39 // pred_check
          %p320 = pneg %p149
        $region54: #{tpu_custom_call.1} parent=39 // pred_check_branch
          %322 = sbr.rel (%p320) target = $region56
        $region55: #{tpu_custom_call.1} parent=39 // pred_region
          %323 = dma.done %s316, 4608
        $region56: #{tpu_custom_call.1} parent=39 // pred_fallthru
          _
        %p324 = pneg %p45
        %p325 = pneg %p42
        %s326 = sand.u32 %s58, 1
        %s327 = scalar_lea.sflag [#allocation4], %s326
        %s328 = sand.u32 %s58, 1
        %s329 = smul.addr %s328, 288
        %s330 = scalar_lea.vmem [#allocation3], %s329
        %p331 = pneg %p71
        %p332 = pneg %p68
        %s333 = sand.u32 %s29, 1
        %s334 = scalar_lea.sflag [#allocation7], %s333
        %s335 = sand.u32 %s84, 1
        %s336 = smul.addr %s335, 288
        %s337 = scalar_lea.vmem [#allocation6], %s336
        %p338 = pneg %p97
        %p339 = pneg %p94
        %s340 = sand.u32 %s29, 1
        %s341 = scalar_lea.sflag [#allocation7], %s340
        %s342 = sand.u32 %s110, 1
        %s343 = smul.addr %s342, 288
        %s344 = scalar_lea.vmem [#allocation8], %s343
        %p345 = pneg %p123
        %p346 = pneg %p120
        %s347 = sand.u32 %s136, 1
        %s348 = scalar_lea.sflag [#allocation10], %s347
        %s349 = sand.u32 %s136, 1
        %s350 = smul.addr %s349, 288
        %s351 = scalar_lea.vmem [#allocation9], %s350
        %p352 = pneg %p149
        %p353 = pneg %p146
        %p354 = pneg %p175
        %p355 = pneg %p172
        %s356 = sand.u32 %s162, 1
        %s357 = scalar_lea.sflag [#allocation5], %s356
        %s358 = sand.u32 %s162, 1
        %s359 = smul.addr %s358, 288
        %s360 = scalar_lea.vmem [#allocation11], %s359
        %s361 = smul.u32 36, %s29
        %s362 = smul.u32 36, %s29
        %s363 = smul.u32 36, %s29
        %s364 = smul.u32 36, %s29
        %s365 = smul.u32 36, %s29
        %s366 = sld [smem:[#allocation2]]
        %v367 = vld [vmem:[%s292] sm:$0xff]
        %v368 = vld [vmem:[%s292 + $0x8] sm:$0xff]
        %v369 = vld [vmem:[%s292 + $0x10] sm:$0xff]
        %v370 = vld [vmem:[%s292 + $0x18] sm:$0xff]
        %v371 = vld [vmem:[%s292 + $0x20] sm:$0xff]
        %v372 = vld [vmem:[%s292 + $0x28] sm:$0xff]
        %v373 = vld [vmem:[%s292 + $0x30] sm:$0xff]
        %v374 = vld [vmem:[%s292 + $0x38] sm:$0xff]
        %v375 = vld [vmem:[%s292 + $0x40] sm:$0xff]
        %v376 = vld [vmem:[%s292 + $0x48] sm:$0xff]
        %v377 = vld [vmem:[%s292 + $0x50] sm:$0xff]
        %v378 = vld [vmem:[%s292 + $0x58] sm:$0xff]
        %v379 = vld [vmem:[%s292 + $0x60] sm:$0xff]
        %v380 = vld [vmem:[%s292 + $0x68] sm:$0xff]
        %v381 = vld [vmem:[%s292 + $0x70] sm:$0xff]
        %v382 = vld [vmem:[%s292 + $0x78] sm:$0xff]
        %v383 = vld [vmem:[%s292 + $0x80] sm:$0xff]
        %v384 = vld [vmem:[%s292 + $0x88] sm:$0xff]
        %v385 = vld [vmem:[%s292 + $0x90] sm:$0xff]
        %v386 = vld [vmem:[%s292 + $0x98] sm:$0xff]
        %v387 = vld [vmem:[%s292 + $0xa0] sm:$0xff]
        %v388 = vld [vmem:[%s292 + $0xa8] sm:$0xff]
        %v389 = vld [vmem:[%s292 + $0xb0] sm:$0xff]
        %v390 = vld [vmem:[%s292 + $0xb8] sm:$0xff]
        %v391 = vld [vmem:[%s292 + $0xc0] sm:$0xff]
        %v392 = vld [vmem:[%s292 + $0xc8] sm:$0xff]
        %v393 = vld [vmem:[%s292 + $0xd0] sm:$0xff]
        %v394 = vld [vmem:[%s292 + $0xd8] sm:$0xff]
        %v395 = vld [vmem:[%s292 + $0xe0] sm:$0xff]
        %v396 = vld [vmem:[%s292 + $0xe8] sm:$0xff]
        %v397 = vld [vmem:[%s292 + $0xf0] sm:$0xff]
        %v398 = vld [vmem:[%s292 + $0xf8] sm:$0xff]
        %v399 = vld [vmem:[%s292 + $0x100] sm:$0xff]
        %v400 = vld [vmem:[%s292 + $0x108] sm:$0xff]
        %v401 = vld [vmem:[%s292 + $0x110] sm:$0xff]
        %v402 = vld [vmem:[%s292 + $0x118] sm:$0xff]
        %v403 = vld [vmem:[%s301] sm:$0xff]
        %v404 = vld [vmem:[%s301 + $0x8] sm:$0xff]
        %v405 = vld [vmem:[%s301 + $0x10] sm:$0xff]
        %v406 = vld [vmem:[%s301 + $0x18] sm:$0xff]
        %v407 = vld [vmem:[%s301 + $0x20] sm:$0xff]
        %v408 = vld [vmem:[%s301 + $0x28] sm:$0xff]
        %v409 = vld [vmem:[%s301 + $0x30] sm:$0xff]
        %v410 = vld [vmem:[%s301 + $0x38] sm:$0xff]
        %v411 = vld [vmem:[%s301 + $0x40] sm:$0xff]
        %v412 = vld [vmem:[%s301 + $0x48] sm:$0xff]
        %v413 = vld [vmem:[%s301 + $0x50] sm:$0xff]
        %v414 = vld [vmem:[%s301 + $0x58] sm:$0xff]
        %v415 = vld [vmem:[%s301 + $0x60] sm:$0xff]
        %v416 = vld [vmem:[%s301 + $0x68] sm:$0xff]
        %v417 = vld [vmem:[%s301 + $0x70] sm:$0xff]
        %v418 = vld [vmem:[%s301 + $0x78] sm:$0xff]
        %v419 = vld [vmem:[%s301 + $0x80] sm:$0xff]
        %v420 = vld [vmem:[%s301 + $0x88] sm:$0xff]
        %v421 = vld [vmem:[%s301 + $0x90] sm:$0xff]
        %v422 = vld [vmem:[%s301 + $0x98] sm:$0xff]
        %v423 = vld [vmem:[%s301 + $0xa0] sm:$0xff]
        %v424 = vld [vmem:[%s301 + $0xa8] sm:$0xff]
        %v425 = vld [vmem:[%s301 + $0xb0] sm:$0xff]
        %v426 = vld [vmem:[%s301 + $0xb8] sm:$0xff]
        %v427 = vld [vmem:[%s301 + $0xc0] sm:$0xff]
        %v428 = vld [vmem:[%s301 + $0xc8] sm:$0xff]
        %v429 = vld [vmem:[%s301 + $0xd0] sm:$0xff]
        %v430 = vld [vmem:[%s301 + $0xd8] sm:$0xff]
        %v431 = vld [vmem:[%s301 + $0xe0] sm:$0xff]
        %v432 = vld [vmem:[%s301 + $0xe8] sm:$0xff]
        %v433 = vld [vmem:[%s301 + $0xf0] sm:$0xff]
        %v434 = vld [vmem:[%s301 + $0xf8] sm:$0xff]
        %v435 = vld [vmem:[%s301 + $0x100] sm:$0xff]
        %v436 = vld [vmem:[%s301 + $0x108] sm:$0xff]
        %v437 = vld [vmem:[%s301 + $0x110] sm:$0xff]
        %v438 = vld [vmem:[%s301 + $0x118] sm:$0xff]
        %v439 = vld [vmem:[%s310] sm:$0xff]
        %v440 = vld [vmem:[%s310 + $0x8] sm:$0xff]
        %v441 = vld [vmem:[%s310 + $0x10] sm:$0xff]
        %v442 = vld [vmem:[%s310 + $0x18] sm:$0xff]
        %v443 = vld [vmem:[%s310 + $0x20] sm:$0xff]
        %v444 = vld [vmem:[%s310 + $0x28] sm:$0xff]
        %v445 = vld [vmem:[%s310 + $0x30] sm:$0xff]
        %v446 = vld [vmem:[%s310 + $0x38] sm:$0xff]
        %v447 = vld [vmem:[%s310 + $0x40] sm:$0xff]
        %v448 = vld [vmem:[%s310 + $0x48] sm:$0xff]
        %v449 = vld [vmem:[%s310 + $0x50] sm:$0xff]
        %v450 = vld [vmem:[%s310 + $0x58] sm:$0xff]
        %v451 = vld [vmem:[%s310 + $0x60] sm:$0xff]
        %v452 = vld [vmem:[%s310 + $0x68] sm:$0xff]
        %v453 = vld [vmem:[%s310 + $0x70] sm:$0xff]
        %v454 = vld [vmem:[%s310 + $0x78] sm:$0xff]
        %v455 = vld [vmem:[%s310 + $0x80] sm:$0xff]
        %v456 = vld [vmem:[%s310 + $0x88] sm:$0xff]
        %v457 = vld [vmem:[%s310 + $0x90] sm:$0xff]
        %v458 = vld [vmem:[%s310 + $0x98] sm:$0xff]
        %v459 = vld [vmem:[%s310 + $0xa0] sm:$0xff]
        %v460 = vld [vmem:[%s310 + $0xa8] sm:$0xff]
        %v461 = vld [vmem:[%s310 + $0xb0] sm:$0xff]
        %v462 = vld [vmem:[%s310 + $0xb8] sm:$0xff]
        %v463 = vld [vmem:[%s310 + $0xc0] sm:$0xff]
        %v464 = vld [vmem:[%s310 + $0xc8] sm:$0xff]
        %v465 = vld [vmem:[%s310 + $0xd0] sm:$0xff]
        %v466 = vld [vmem:[%s310 + $0xd8] sm:$0xff]
        %v467 = vld [vmem:[%s310 + $0xe0] sm:$0xff]
        %v468 = vld [vmem:[%s310 + $0xe8] sm:$0xff]
        %v469 = vld [vmem:[%s310 + $0xf0] sm:$0xff]
        %v470 = vld [vmem:[%s310 + $0xf8] sm:$0xff]
        %v471 = vld [vmem:[%s310 + $0x100] sm:$0xff]
        %v472 = vld [vmem:[%s310 + $0x108] sm:$0xff]
        %v473 = vld [vmem:[%s310 + $0x110] sm:$0xff]
        %v474 = vld [vmem:[%s310 + $0x118] sm:$0xff]
        %v475 = vld [vmem:[%s319] sm:$0xff]
        %v476 = vld [vmem:[%s319 + $0x8] sm:$0xff]
        %v477 = vld [vmem:[%s319 + $0x10] sm:$0xff]
        %v478 = vld [vmem:[%s319 + $0x18] sm:$0xff]
        %v479 = vld [vmem:[%s319 + $0x20] sm:$0xff]
        %v480 = vld [vmem:[%s319 + $0x28] sm:$0xff]
        %v481 = vld [vmem:[%s319 + $0x30] sm:$0xff]
        %v482 = vld [vmem:[%s319 + $0x38] sm:$0xff]
        %v483 = vld [vmem:[%s319 + $0x40] sm:$0xff]
        %v484 = vld [vmem:[%s319 + $0x48] sm:$0xff]
        %v485 = vld [vmem:[%s319 + $0x50] sm:$0xff]
        %v486 = vld [vmem:[%s319 + $0x58] sm:$0xff]
        %v487 = vld [vmem:[%s319 + $0x60] sm:$0xff]
        %v488 = vld [vmem:[%s319 + $0x68] sm:$0xff]
        %v489 = vld [vmem:[%s319 + $0x70] sm:$0xff]
        %v490 = vld [vmem:[%s319 + $0x78] sm:$0xff]
        %v491 = vld [vmem:[%s319 + $0x80] sm:$0xff]
        %v492 = vld [vmem:[%s319 + $0x88] sm:$0xff]
        %v493 = vld [vmem:[%s319 + $0x90] sm:$0xff]
        %v494 = vld [vmem:[%s319 + $0x98] sm:$0xff]
        %v495 = vld [vmem:[%s319 + $0xa0] sm:$0xff]
        %v496 = vld [vmem:[%s319 + $0xa8] sm:$0xff]
        %v497 = vld [vmem:[%s319 + $0xb0] sm:$0xff]
        %v498 = vld [vmem:[%s319 + $0xb8] sm:$0xff]
        %v499 = vld [vmem:[%s319 + $0xc0] sm:$0xff]
        %v500 = vld [vmem:[%s319 + $0xc8] sm:$0xff]
        %v501 = vld [vmem:[%s319 + $0xd0] sm:$0xff]
        %v502 = vld [vmem:[%s319 + $0xd8] sm:$0xff]
        %v503 = vld [vmem:[%s319 + $0xe0] sm:$0xff]
        %v504 = vld [vmem:[%s319 + $0xe8] sm:$0xff]
        %v505 = vld [vmem:[%s319 + $0xf0] sm:$0xff]
        %v506 = vld [vmem:[%s319 + $0xf8] sm:$0xff]
        %v507 = vld [vmem:[%s319 + $0x100] sm:$0xff]
        %v508 = vld [vmem:[%s319 + $0x108] sm:$0xff]
        %v509 = vld [vmem:[%s319 + $0x110] sm:$0xff]
        %v510 = vld [vmem:[%s319 + $0x118] sm:$0xff]
        %v511 = vadd.f32 %v403, %v439
        %v512 = vadd.f32 %v404, %v440
        %v513 = vadd.f32 %v405, %v441
        %v514 = vadd.f32 %v406, %v442
        %v515 = vadd.f32 %v407, %v443
        %v516 = vadd.f32 %v408, %v444
        %v517 = vadd.f32 %v409, %v445
        %v518 = vadd.f32 %v410, %v446
        %v519 = vadd.f32 %v411, %v447
        %v520 = vadd.f32 %v412, %v448
        %v521 = vadd.f32 %v413, %v449
        %v522 = vadd.f32 %v414, %v450
        %v523 = vadd.f32 %v415, %v451
        %v524 = vadd.f32 %v416, %v452
        %v525 = vadd.f32 %v417, %v453
        %v526 = vadd.f32 %v418, %v454
        %v527 = vadd.f32 %v419, %v455
        %v528 = vadd.f32 %v420, %v456
        %v529 = vadd.f32 %v421, %v457
        %v530 = vadd.f32 %v422, %v458
        %v531 = vadd.f32 %v423, %v459
        %v532 = vadd.f32 %v424, %v460
        %v533 = vadd.f32 %v425, %v461
        %v534 = vadd.f32 %v426, %v462
        %v535 = vadd.f32 %v427, %v463
        %v536 = vadd.f32 %v428, %v464
        %v537 = vadd.f32 %v429, %v465
        %v538 = vadd.f32 %v430, %v466
        %v539 = vadd.f32 %v431, %v467
        %v540 = vadd.f32 %v432, %v468
        %v541 = vadd.f32 %v433, %v469
        %v542 = vadd.f32 %v434, %v470
        %v543 = vadd.f32 %v435, %v471
        %v544 = vadd.f32 %v436, %v472
        %v545 = vadd.f32 %v437, %v473
        %v546 = vadd.f32 %v438, %v474
        %v547 = vadd.f32 %v511, %v475
        %v548 = vadd.f32 %v512, %v476
        %v549 = vadd.f32 %v513, %v477
        %v550 = vadd.f32 %v514, %v478
        %v551 = vadd.f32 %v515, %v479
        %v552 = vadd.f32 %v516, %v480
        %v553 = vadd.f32 %v517, %v481
        %v554 = vadd.f32 %v518, %v482
        %v555 = vadd.f32 %v519, %v483
        %v556 = vadd.f32 %v520, %v484
        %v557 = vadd.f32 %v521, %v485
        %v558 = vadd.f32 %v522, %v486
        %v559 = vadd.f32 %v523, %v487
        %v560 = vadd.f32 %v524, %v488
        %v561 = vadd.f32 %v525, %v489
        %v562 = vadd.f32 %v526, %v490
        %v563 = vadd.f32 %v527, %v491
        %v564 = vadd.f32 %v528, %v492
        %v565 = vadd.f32 %v529, %v493
        %v566 = vadd.f32 %v530, %v494
        %v567 = vadd.f32 %v531, %v495
        %v568 = vadd.f32 %v532, %v496
        %v569 = vadd.f32 %v533, %v497
        %v570 = vadd.f32 %v534, %v498
        %v571 = vadd.f32 %v535, %v499
        %v572 = vadd.f32 %v536, %v500
        %v573 = vadd.f32 %v537, %v501
        %v574 = vadd.f32 %v538, %v502
        %v575 = vadd.f32 %v539, %v503
        %v576 = vadd.f32 %v540, %v504
        %v577 = vadd.f32 %v541, %v505
        %v578 = vadd.f32 %v542, %v506
        %v579 = vadd.f32 %v543, %v507
        %v580 = vadd.f32 %v544, %v508
        %v581 = vadd.f32 %v545, %v509
        %v582 = vadd.f32 %v546, %v510
        %s583 = ssub.f32 0.0, %s366
        %v584 = vstv %s583
        %v585 = vmul.f32 %v584, %v367
        %v586 = vmul.f32 %v584, %v368
        %v587 = vmul.f32 %v584, %v369
        %v588 = vmul.f32 %v584, %v370
        %v589 = vmul.f32 %v584, %v371
        %v590 = vmul.f32 %v584, %v372
        %v591 = vmul.f32 %v584, %v373
        %v592 = vmul.f32 %v584, %v374
        %v593 = vmul.f32 %v584, %v375
        %v594 = vmul.f32 %v584, %v376
        %v595 = vmul.f32 %v584, %v377
        %v596 = vmul.f32 %v584, %v378
        %v597 = vmul.f32 %v584, %v379
        %v598 = vmul.f32 %v584, %v380
        %v599 = vmul.f32 %v584, %v381
        %v600 = vmul.f32 %v584, %v382
        %v601 = vmul.f32 %v584, %v383
        %v602 = vmul.f32 %v584, %v384
        %v603 = vmul.f32 %v584, %v385
        %v604 = vmul.f32 %v584, %v386
        %v605 = vmul.f32 %v584, %v387
        %v606 = vmul.f32 %v584, %v388
        %v607 = vmul.f32 %v584, %v389
        %v608 = vmul.f32 %v584, %v390
        %v609 = vmul.f32 %v584, %v391
        %v610 = vmul.f32 %v584, %v392
        %v611 = vmul.f32 %v584, %v393
        %v612 = vmul.f32 %v584, %v394
        %v613 = vmul.f32 %v584, %v395
        %v614 = vmul.f32 %v584, %v396
        %v615 = vmul.f32 %v584, %v397
        %v616 = vmul.f32 %v584, %v398
        %v617 = vmul.f32 %v584, %v399
        %v618 = vmul.f32 %v584, %v400
        %v619 = vmul.f32 %v584, %v401
        %v620 = vmul.f32 %v584, %v402
        %v621 = vmul.f32 %v585, 1.442695
        %v622 = vpow.pop %v621
        %v623 = vmul.f32 %v586, 1.442695
        %v624 = vpow.pop %v623
        %v625 = vmul.f32 %v587, 1.442695
        %v626 = vpow.pop %v625
        %v627 = vmul.f32 %v588, 1.442695
        %v628 = vpow.pop %v627
        %v629 = vmul.f32 %v589, 1.442695
        %v630 = vpow.pop %v629
        %v631 = vmul.f32 %v590, 1.442695
        %v632 = vpow.pop %v631
        %v633 = vmul.f32 %v591, 1.442695
        %v634 = vpow.pop %v633
        %v635 = vmul.f32 %v592, 1.442695
        %v636 = vpow.pop %v635
        %v637 = vmul.f32 %v593, 1.442695
        %v638 = vpow.pop %v637
        %v639 = vmul.f32 %v594, 1.442695
        %v640 = vpow.pop %v639
        %v641 = vmul.f32 %v595, 1.442695
        %v642 = vpow.pop %v641
        %v643 = vmul.f32 %v596, 1.442695
        %v644 = vpow.pop %v643
        %v645 = vmul.f32 %v597, 1.442695
        %v646 = vpow.pop %v645
        %v647 = vmul.f32 %v598, 1.442695
        %v648 = vpow.pop %v647
        %v649 = vmul.f32 %v599, 1.442695
        %v650 = vpow.pop %v649
        %v651 = vmul.f32 %v600, 1.442695
        %v652 = vpow.pop %v651
        %v653 = vmul.f32 %v601, 1.442695
        %v654 = vpow.pop %v653
        %v655 = vmul.f32 %v602, 1.442695
        %v656 = vpow.pop %v655
        %v657 = vmul.f32 %v603, 1.442695
        %v658 = vpow.pop %v657
        %v659 = vmul.f32 %v604, 1.442695
        %v660 = vpow.pop %v659
        %v661 = vmul.f32 %v605, 1.442695
        %v662 = vpow.pop %v661
        %v663 = vmul.f32 %v606, 1.442695
        %v664 = vpow.pop %v663
        %v665 = vmul.f32 %v607, 1.442695
        %v666 = vpow.pop %v665
        %v667 = vmul.f32 %v608, 1.442695
        %v668 = vpow.pop %v667
        %v669 = vmul.f32 %v609, 1.442695
        %v670 = vpow.pop %v669
        %v671 = vmul.f32 %v610, 1.442695
        %v672 = vpow.pop %v671
        %v673 = vmul.f32 %v611, 1.442695
        %v674 = vpow.pop %v673
        %v675 = vmul.f32 %v612, 1.442695
        %v676 = vpow.pop %v675
        %v677 = vmul.f32 %v613, 1.442695
        %v678 = vpow.pop %v677
        %v679 = vmul.f32 %v614, 1.442695
        %v680 = vpow.pop %v679
        %v681 = vmul.f32 %v615, 1.442695
        %v682 = vpow.pop %v681
        %v683 = vmul.f32 %v616, 1.442695
        %v684 = vpow.pop %v683
        %v685 = vmul.f32 %v617, 1.442695
        %v686 = vpow.pop %v685
        %v687 = vmul.f32 %v618, 1.442695
        %v688 = vpow.pop %v687
        %v689 = vmul.f32 %v619, 1.442695
        %v690 = vpow.pop %v689
        %v691 = vmul.f32 %v620, 1.442695
        %v692 = vpow.pop %v691
        %v693 = vmul.f32 %v622, %v439
        %v694 = vmul.f32 %v624, %v440
        %v695 = vmul.f32 %v626, %v441
        %v696 = vmul.f32 %v628, %v442
        %v697 = vmul.f32 %v630, %v443
        %v698 = vmul.f32 %v632, %v444
        %v699 = vmul.f32 %v634, %v445
        %v700 = vmul.f32 %v636, %v446
        %v701 = vmul.f32 %v638, %v447
        %v702 = vmul.f32 %v640, %v448
        %v703 = vmul.f32 %v642, %v449
        %v704 = vmul.f32 %v644, %v450
        %v705 = vmul.f32 %v646, %v451
        %v706 = vmul.f32 %v648, %v452
        %v707 = vmul.f32 %v650, %v453
        %v708 = vmul.f32 %v652, %v454
        %v709 = vmul.f32 %v654, %v455
        %v710 = vmul.f32 %v656, %v456
        %v711 = vmul.f32 %v658, %v457
        %v712 = vmul.f32 %v660, %v458
        %v713 = vmul.f32 %v662, %v459
        %v714 = vmul.f32 %v664, %v460
        %v715 = vmul.f32 %v666, %v461
        %v716 = vmul.f32 %v668, %v462
        %v717 = vmul.f32 %v670, %v463
        %v718 = vmul.f32 %v672, %v464
        %v719 = vmul.f32 %v674, %v465
        %v720 = vmul.f32 %v676, %v466
        %v721 = vmul.f32 %v678, %v467
        %v722 = vmul.f32 %v680, %v468
        %v723 = vmul.f32 %v682, %v469
        %v724 = vmul.f32 %v684, %v470
        %v725 = vmul.f32 %v686, %v471
        %v726 = vmul.f32 %v688, %v472
        %v727 = vmul.f32 %v690, %v473
        %v728 = vmul.f32 %v692, %v474
        %v729 = vadd.f32 %v547, %v693
        %v730 = vadd.f32 %v548, %v694
        %v731 = vadd.f32 %v549, %v695
        %v732 = vadd.f32 %v550, %v696
        %v733 = vadd.f32 %v551, %v697
        %v734 = vadd.f32 %v552, %v698
        %v735 = vadd.f32 %v553, %v699
        %v736 = vadd.f32 %v554, %v700
        %v737 = vadd.f32 %v555, %v701
        %v738 = vadd.f32 %v556, %v702
        %v739 = vadd.f32 %v557, %v703
        %v740 = vadd.f32 %v558, %v704
        %v741 = vadd.f32 %v559, %v705
        %v742 = vadd.f32 %v560, %v706
        %v743 = vadd.f32 %v561, %v707
        %v744 = vadd.f32 %v562, %v708
        %v745 = vadd.f32 %v563, %v709
        %v746 = vadd.f32 %v564, %v710
        %v747 = vadd.f32 %v565, %v711
        %v748 = vadd.f32 %v566, %v712
        %v749 = vadd.f32 %v567, %v713
        %v750 = vadd.f32 %v568, %v714
        %v751 = vadd.f32 %v569, %v715
        %v752 = vadd.f32 %v570, %v716
        %v753 = vadd.f32 %v571, %v717
        %v754 = vadd.f32 %v572, %v718
        %v755 = vadd.f32 %v573, %v719
        %v756 = vadd.f32 %v574, %v720
        %v757 = vadd.f32 %v575, %v721
        %v758 = vadd.f32 %v576, %v722
        %v759 = vadd.f32 %v577, %v723
        %v760 = vadd.f32 %v578, %v724
        %v761 = vadd.f32 %v579, %v725
        %v762 = vadd.f32 %v580, %v726
        %v763 = vadd.f32 %v581, %v727
        %v764 = vadd.f32 %v582, %v728
        %765 = vst [vmem:[%s360] sm:$0xff] %v729
        %766 = vst [vmem:[%s360 + $0x8] sm:$0xff] %v730
        %767 = vst [vmem:[%s360 + $0x10] sm:$0xff] %v731
        %768 = vst [vmem:[%s360 + $0x18] sm:$0xff] %v732
        %769 = vst [vmem:[%s360 + $0x20] sm:$0xff] %v733
        %770 = vst [vmem:[%s360 + $0x28] sm:$0xff] %v734
        %771 = vst [vmem:[%s360 + $0x30] sm:$0xff] %v735
        %772 = vst [vmem:[%s360 + $0x38] sm:$0xff] %v736
        %773 = vst [vmem:[%s360 + $0x40] sm:$0xff] %v737
        %774 = vst [vmem:[%s360 + $0x48] sm:$0xff] %v738
        %775 = vst [vmem:[%s360 + $0x50] sm:$0xff] %v739
        %776 = vst [vmem:[%s360 + $0x58] sm:$0xff] %v740
        %777 = vst [vmem:[%s360 + $0x60] sm:$0xff] %v741
        %778 = vst [vmem:[%s360 + $0x68] sm:$0xff] %v742
        %779 = vst [vmem:[%s360 + $0x70] sm:$0xff] %v743
        %780 = vst [vmem:[%s360 + $0x78] sm:$0xff] %v744
        %781 = vst [vmem:[%s360 + $0x80] sm:$0xff] %v745
        %782 = vst [vmem:[%s360 + $0x88] sm:$0xff] %v746
        %783 = vst [vmem:[%s360 + $0x90] sm:$0xff] %v747
        %784 = vst [vmem:[%s360 + $0x98] sm:$0xff] %v748
        %785 = vst [vmem:[%s360 + $0xa0] sm:$0xff] %v749
        %786 = vst [vmem:[%s360 + $0xa8] sm:$0xff] %v750
        %787 = vst [vmem:[%s360 + $0xb0] sm:$0xff] %v751
        %788 = vst [vmem:[%s360 + $0xb8] sm:$0xff] %v752
        %789 = vst [vmem:[%s360 + $0xc0] sm:$0xff] %v753
        %790 = vst [vmem:[%s360 + $0xc8] sm:$0xff] %v754
        %791 = vst [vmem:[%s360 + $0xd0] sm:$0xff] %v755
        %792 = vst [vmem:[%s360 + $0xd8] sm:$0xff] %v756
        %793 = vst [vmem:[%s360 + $0xe0] sm:$0xff] %v757
        %794 = vst [vmem:[%s360 + $0xe8] sm:$0xff] %v758
        %795 = vst [vmem:[%s360 + $0xf0] sm:$0xff] %v759
        %796 = vst [vmem:[%s360 + $0xf8] sm:$0xff] %v760
        %797 = vst [vmem:[%s360 + $0x100] sm:$0xff] %v761
        %798 = vst [vmem:[%s360 + $0x108] sm:$0xff] %v762
        %799 = vst [vmem:[%s360 + $0x110] sm:$0xff] %v763
        %800 = vst [vmem:[%s360 + $0x118] sm:$0xff] %v764
        %s801 = sand.u32 %s162, 1
        %s802 = scalar_lea.sflag [#allocation5], %s801
        %s803 = sand.u32 %s162, 1
        %s804 = smul.addr %s803, 288
        %s805 = scalar_lea.vmem [#allocation11], %s804
        // Predicated region
        $region57: #{tpu_custom_call.1} parent=39 // pred_check
          %p806 = pneg %p172
        $region58: #{tpu_custom_call.1} parent=39 // pred_check_branch
          %808 = sbr.rel (%p806) target = $region60
        $region59: #{tpu_custom_call.1} parent=39 // pred_region
          %s809 = smul.u32 36, %s29
          %s811 = ssub.s32 4608, 4608
          %812 = vsyncadd %s802, %s811
          %s813 = smul.addr %s809, 128
          %s814 = scalar_lea.hbm %s5, %s813
          %s815 = sshll.u32 %s805, 4
          %s816 = int_to_ptr.vmem [resolvable:$true] %s815
          %821 = dma.vmem_to_hbm [thread:$0]  %s816, 4608, %s814, %s802, 128, 128, 8
        $region60: #{tpu_custom_call.1} parent=39 // pred_fallthru
          _
      $region40: #{tpu_custom_call.1} parent=5 // pred_fallthru
        _
      %p822 = scmp.le.s32.totalorder 2, %s24
      // Predicated region
      $region61: #{tpu_custom_call.1} parent=5 // pred_check
        %p823 = pneg %p822
      $region62: #{tpu_custom_call.1} parent=5 // pred_check_branch
        %825 = sbr.rel (%p823) target = $region64
      $region63: #{tpu_custom_call.1} parent=5 // pred_region
        %s826 = ssub.s32 %s24, 2
        // Predicated region
        $region65: #{tpu_custom_call.1} parent=63 // pred_check
          %p827 = pneg %p178
        $region66: #{tpu_custom_call.1} parent=63 // pred_check_branch
          %829 = sbr.rel (%p827) target = $region68
        $region67: #{tpu_custom_call.1} parent=63 // pred_region
          %s830 = sand.u32 %s163, 1
          %s831 = scalar_lea.sflag [#allocation5], %s830
          %s832 = sand.u32 %s163, 1
          %s833 = smul.addr %s832, 288
          %s834 = scalar_lea.vmem [#allocation11], %s833
          %835 = dma.done %s831, 4608
        $region68: #{tpu_custom_call.1} parent=63 // pred_fallthru
          _
      $region64: #{tpu_custom_call.1} parent=5 // pred_fallthru
        _
    $region6: #{tpu_custom_call.1} parent=1 // loop_footer
      %s28 = sadd.s32 1, %s24
    $region7: #{tpu_custom_call.1} parent=1 // loop_footer_branch
      %23 = sbr.rel target = $region3
    $region8: #{tpu_custom_call.1} parent=1 // loop_exit
      _
    %836 = vsyncpa [#allocation4], 1
    %s837 = scalar_lea.sflag [#allocation4], 1
    %838 = vsyncpa %s837, 1
    %839 = vsyncpa [#allocation7], 1
    %s840 = scalar_lea.sflag [#allocation7], 1
    %841 = vsyncpa %s840, 1
    %842 = vsyncpa [#allocation10], 1
    %s843 = scalar_lea.sflag [#allocation10], 1
    %844 = vsyncpa %s843, 1
    %845 = vsyncpa [#allocation5], 1
    %s846 = scalar_lea.sflag [#allocation5], 1
    %847 = vsyncpa %s846, 1

</llo_original>
